<compile_context>
chip_gen: v5e
topology: v5e:2x2
jax: 0.10.0
libtpu: 0.0.40
codegen_flags: <defaults>
</compile_context>

<pallas_src>
import functools

import jax
import jax.numpy as jnp
from jax import lax
from jax.experimental import pallas as pl
from jax.experimental.pallas import tpu as pltpu

_LN_EPS = 1e-5


def _round_up(v, m):
    return (v + m - 1) // m * m


def _dfsmn_kernel(xw_ref, w_ref, consts_ref, c_ref, o_ref, *, hidden_dim):
    # xw_ref:     (win, Dp)     halo'd input window (zero outside the sequence)
    # w_ref:      (Dp, Hp)      linear weight (in, out), zero-padded
    # consts_ref: (3, Hp)       rows = [bias, ln_gamma, ln_beta], zero-padded
    # c_ref:      (tile_t, win) exact banded context coefficients for this tile
    # o_ref:      (tile_t, Hp)
    x = xw_ref[...]

    # Linear: h = x @ W + b   (MXU, f32 accumulation)
    h = jnp.dot(x, w_ref[...], preferred_element_type=jnp.float32)
    h = h + consts_ref[0:1, :]

    # current + memory + look-ahead context as one small banded matmul (MXU).
    y = jnp.dot(c_ref[...], h, preferred_element_type=jnp.float32)  # (tile_t, Hp)

    # LayerNorm over the real hidden columns (padded cols of y are exactly 0).
    inv_h = 1.0 / hidden_dim
    mean = jnp.sum(y, axis=-1, keepdims=True) * inv_h
    col = lax.broadcasted_iota(jnp.int32, y.shape, 1)
    yc = jnp.where(col < hidden_dim, y - mean, 0.0)
    var = jnp.sum(yc * yc, axis=-1, keepdims=True) * inv_h
    inv = lax.rsqrt(var + _LN_EPS)                                   # EUP
    o_ref[...] = (yc * inv * consts_ref[1:2, :] + consts_ref[2:3, :]).astype(o_ref.dtype)


def _build_context_windows(T, NT, tile_t, halo_lo, win,
                           mem_sum, fut_sum, memory_size, look_ahead, stride):
    """C_win[tt, i, j] = coefficient of h[tt*tile_t - halo_lo + j] in the
    pre-LayerNorm output at time t = tt*tile_t + i (exact PyTorch semantics,
    including the truncated head anchored at t=0 and stride > 1)."""
    tt = jnp.arange(NT, dtype=jnp.int32)[:, None, None]
    ii = jnp.arange(tile_t, dtype=jnp.int32)[None, :, None]
    jj = jnp.arange(win, dtype=jnp.int32)[None, None, :]
    t = tt * tile_t + ii                       # (NT, tile_t, 1)
    s = tt * tile_t - halo_lo + jj             # (NT, 1, win)
    valid = (s >= 0) & (s < T) & (t < T)

    c = jnp.where((s == t) & valid, 1.0, 0.0).astype(jnp.float32)   # current term

    if memory_size > 0:
        mem_start = jnp.maximum(0, t - memory_size * stride)
        rel = s - mem_start
        mmask = valid & (s >= mem_start) & (s < t) & (rel % stride == 0)
        mk = jnp.clip(rel // stride, 0, memory_size - 1)
        c = c + jnp.where(mmask, mem_sum[mk], 0.0)

    if look_ahead > 0:
        fut_end = jnp.minimum(T, t + look_ahead * stride + 1)
        relf = s - (t + stride)
        fmask = valid & (s >= t + stride) & (s < fut_end) & (relf % stride == 0)
        fk = jnp.clip(relf // stride, 0, look_ahead - 1)
        c = c + jnp.where(fmask, fut_sum[fk], 0.0)
    return c                                                        # (NT, tile_t, win)


@functools.partial(jax.jit,
                   static_argnames=("memory_size", "look_ahead", "stride", "tile_t"))
def dfsmn_layer(x, params, *, memory_size, look_ahead, stride=1, tile_t=256):
    """x: (batch, seq_len, input_dim) f32 -> (batch, seq_len, hidden_dim)."""
    B, T, D = x.shape
    H = params["w"].shape[1]
    f32 = jnp.float32

    Dp = _round_up(D, 128)                     # lane-dense / MXU-aligned dims
    Hp = _round_up(H, 128)
    halo_lo = memory_size * stride
    halo_hi = look_ahead * stride

    tile_t = max(8, _round_up(min(tile_t, _round_up(T, 8)), 8))
    NT = pl.cdiv(T, tile_t)
    Tp = NT * tile_t
    win = _round_up(tile_t + halo_lo + halo_hi, 8)

    # Padded linear weight + fused (bias, gamma, beta) constants.
    w_p = jnp.zeros((Dp, Hp), f32).at[:D, :H].set(params["w"].astype(f32))
    consts = (jnp.zeros((3, Hp), f32)
              .at[0, :H].set(params["b"].astype(f32))
              .at[1, :H].set(params["gamma"].astype(f32))
              .at[2, :H].set(params["beta"].astype(f32)))

    # Tap weights enter the forward pass only through their row-sums.
    mem_sum = jnp.sum(params["memory_weights"].astype(f32), axis=-1)
    fut_sum = jnp.sum(params["look_ahead_weights"].astype(f32), axis=-1)
    cw = _build_context_windows(T, NT, tile_t, halo_lo, win, mem_sum, fut_sum,
                                memory_size, look_ahead, stride)

    # Zero-padded, halo'd input windows: xw[b, tt, j] = x[b, tt*tile_t - halo_lo + j].
    pad_len = Tp + (win - tile_t)
    xp = jnp.zeros((B, pad_len, Dp), x.dtype).at[:, halo_lo:halo_lo + T, :D].set(x)
    widx = jnp.arange(NT)[:, None] * tile_t + jnp.arange(win)[None, :]
    xw = xp[:, widx, :]                                             # (B, NT, win, Dp)

    blk_bytes = 4 * (win * Dp + tile_t * win + tile_t * Hp)         # pipelined blocks
    fixed_bytes = 4 * (Dp * Hp + 8 * Hp)
    vmem_limit = int(min(48 * 1024 * 1024,
                         max(16 * 1024 * 1024, 4 * (blk_bytes + fixed_bytes))))

    flops = 2 * B * NT * Hp * (win * Dp + tile_t * win) + 8 * B * Tp * Hp
    cost = pl.CostEstimate(
        flops=int(flops),
        transcendentals=int(B * Tp),
        bytes_accessed=int(4 * (xw.size + cw.size + w_p.size + consts.size
                                + B * Tp * Hp)))

    kernel = functools.partial(_dfsmn_kernel, hidden_dim=H)
    out = pl.pallas_call(
        kernel,
        out_shape=jax.ShapeDtypeStruct((B, NT, tile_t, Hp), x.dtype),
        grid=(NT, B),
        in_specs=[
            pl.BlockSpec((None, None, win, Dp), lambda tt, b: (b, tt, 0, 0)),
            pl.BlockSpec((Dp, Hp), lambda tt, b: (0, 0)),
            pl.BlockSpec((3, Hp), lambda tt, b: (0, 0)),
            pl.BlockSpec((None, tile_t, win), lambda tt, b: (tt, 0, 0)),
        ],
        out_specs=pl.BlockSpec((None, None, tile_t, Hp), lambda tt, b: (b, tt, 0, 0)),
        compiler_params=pltpu.CompilerParams(
            dimension_semantics=("parallel", "parallel"),
            vmem_limit_bytes=vmem_limit),
        cost_estimate=cost,
    )(xw, w_p, consts, cw)

    return out.reshape(B, Tp, Hp)[:, :T, :H]


def init_params(key, input_dim, hidden_dim, memory_size, look_ahead):
    ks = jax.random.split(key, 6)
    s = 1.0 / jnp.sqrt(input_dim)
    return {
        # nn.Linear weight stored transposed: (in_features, out_features)
        "w": jax.random.uniform(ks[0], (input_dim, hidden_dim), jnp.float32, -s, s),
        "b": jax.random.uniform(ks[1], (hidden_dim,), jnp.float32, -s, s),
        "memory_weights": jax.random.normal(ks[2], (memory_size, hidden_dim), jnp.float32),
        "look_ahead_weights": jax.random.normal(ks[3], (look_ahead, hidden_dim), jnp.float32),
        "gamma": jnp.ones((hidden_dim,), jnp.float32)
                 + 0.05 * jax.random.normal(ks[4], (hidden_dim,), jnp.float32),
        "beta": 0.05 * jax.random.normal(ks[5], (hidden_dim,), jnp.float32),
    }


def reference(x, p, memory_size, look_ahead, stride):
    """Literal JAX transcription of the PyTorch forward (eval mode)."""
    h = x @ p["w"] + p["b"]
    B, T, H = h.shape
    cols = []
    for t in range(T):
        cur = h[:, t]
        ms = max(0, t - memory_size * stride)
        if ms < t:
            states = h[:, ms:t:stride]
            n = states.shape[1]
            wu = p["memory_weights"][:n]
            cur = cur + jnp.matmul(jnp.swapaxes(states, 1, 2), wu).sum(-1)
        fs = t + stride
        fe = min(T, t + look_ahead * stride + 1)
        if fs < fe:
            states = h[:, fs:fe:stride]
            n = states.shape[1]
            wu = p["look_ahead_weights"][:n]
            cur = cur + jnp.matmul(jnp.swapaxes(states, 1, 2), wu).sum(-1)
        cols.append(cur)
    y = jnp.stack(cols, axis=1)
    mean = y.mean(-1, keepdims=True)
    var = ((y - mean) ** 2).mean(-1, keepdims=True)
    return (y - mean) / jnp.sqrt(var + _LN_EPS) * p["gamma"] + p["beta"]


if __name__ == "__main__":
    key = jax.random.PRNGKey(0)
    k_x, k_p = jax.random.split(key)

    # Small shapes chosen to exercise: stride>1, truncated head/tail windows,
    # multiple time tiles with halos (tile_t=32 -> NT=3), time padding (80->96),
    # and channel padding (D 48->128, H 32->128).
    batch, seq_len, input_dim, hidden_dim = 2, 80, 48, 32
    memory_size, look_ahead, stride = 4, 3, 2

    x = jax.random.normal(k_x, (batch, seq_len, input_dim), dtype=jnp.float32)
    params = init_params(k_p, input_dim, hidden_dim, memory_size, look_ahead)

    out = dfsmn_layer(x, params, memory_size=memory_size,
                      look_ahead=look_ahead, stride=stride, tile_t=32)
    out = jax.block_until_ready(out)

    ref = reference(x, params, memory_size, look_ahead, stride)
    assert out.shape == (batch, seq_len, hidden_dim)
    err = jnp.max(jnp.abs(out - ref))
    assert jnp.allclose(out, ref, atol=5e-4, rtol=5e-4), f"mismatch vs reference, max abs err {err}"

    print("KERNEL_OK")
</pallas_src>

<mosaic_0001>
module attributes {stable_mosaic.version = 11 : i64} {
  func.func @_dfsmn_kernel(%arg0: i32, %arg1: i32, %arg2: memref<1x1x48x128xf32, #tpu.memory_space<vmem>>, %arg3: memref<128x128xf32, #tpu.memory_space<vmem>>, %arg4: memref<3x128xf32, #tpu.memory_space<vmem>>, %arg5: memref<1x32x48xf32, #tpu.memory_space<vmem>>, %arg6: memref<1x1x32x128xf32, #tpu.memory_space<vmem>>) attributes {dimension_semantics = [#tpu.dimension_semantics<parallel>, #tpu.dimension_semantics<parallel>], iteration_bounds = array<i64: 3, 2>, scalar_prefetch = 0 : i64, scratch_operands = 0 : i64, tpu.core_type = #tpu.core_type<tc>, window_params = [{transform_indices = @transform_0, window_bounds = array<i64: 1, 1, 48, 128>}, {pipeline_mode = #tpu.pipeline_mode<synchronous>, transform_indices = @transform_1, window_bounds = array<i64: 128, 128>}, {pipeline_mode = #tpu.pipeline_mode<synchronous>, transform_indices = @transform_2, window_bounds = array<i64: 3, 128>}, {transform_indices = @transform_3, window_bounds = array<i64: 1, 32, 48>}, {transform_indices = @transform_4, window_bounds = array<i64: 1, 1, 32, 128>}]} {
    %c0 = arith.constant 0 : index
    %c0_0 = arith.constant 0 : index
    %c0_1 = arith.constant 0 : index
    %c0_2 = arith.constant 0 : index
    %0 = vector.load %arg2[%c0, %c0_0, %c0_1, %c0_2] : memref<1x1x48x128xf32, #tpu.memory_space<vmem>>, vector<1x1x48x128xf32>
    %1 = vector.shape_cast %0 : vector<1x1x48x128xf32> to vector<48x128xf32>
    %c0_3 = arith.constant 0 : index
    %c0_4 = arith.constant 0 : index
    %2 = vector.load %arg3[%c0_3, %c0_4] : memref<128x128xf32, #tpu.memory_space<vmem>>, vector<128x128xf32>
    %cst = arith.constant dense<0.000000e+00> : vector<48x128xf32>
    %3 = tpu.matmul %1, %2, %cst {dimension_numbers = #tpu.dot_dimension_numbers<[1], [0], [0], [1], [0, 0, 1, 1], [], []>} : vector<48x128xf32>, vector<128x128xf32>, vector<48x128xf32> -> vector<48x128xf32>
    %c0_5 = arith.constant 0 : index
    %c0_6 = arith.constant 0 : index
    %4 = vector.load %arg4[%c0_5, %c0_6] : memref<3x128xf32, #tpu.memory_space<vmem>>, vector<1x128xf32>
    %5 = vector.broadcast %4 : vector<1x128xf32> to vector<48x128xf32>
    %6 = arith.addf %3, %5 : vector<48x128xf32>
    %c0_7 = arith.constant 0 : index
    %c0_8 = arith.constant 0 : index
    %c0_9 = arith.constant 0 : index
    %7 = vector.load %arg5[%c0_7, %c0_8, %c0_9] : memref<1x32x48xf32, #tpu.memory_space<vmem>>, vector<1x32x48xf32>
    %8 = vector.shape_cast %7 : vector<1x32x48xf32> to vector<32x48xf32>
    %cst_10 = arith.constant dense<0.000000e+00> : vector<32x128xf32>
    %9 = tpu.matmul %8, %6, %cst_10 {dimension_numbers = #tpu.dot_dimension_numbers<[1], [0], [0], [1], [0, 0, 1, 1], [], []>} : vector<32x48xf32>, vector<48x128xf32>, vector<32x128xf32> -> vector<32x128xf32>
    %cst_11 = arith.constant dense<0.000000e+00> : vector<32xf32>
    %10 = vector.multi_reduction <add>, %9, %cst_11 [1] : vector<32x128xf32> to vector<32xf32>
    %11 = vector.shape_cast %10 : vector<32xf32> to vector<32x1xf32>
    %cst_12 = arith.constant 3.125000e-02 : f32
    %12 = vector.broadcast %cst_12 : f32 to vector<32x1xf32>
    %13 = arith.mulf %11, %12 : vector<32x1xf32>
    %14 = tpu.iota {dimensions = array<i32: 1>} : vector<32x128xi32>
    %c32_i32 = arith.constant 32 : i32
    %15 = vector.broadcast %c32_i32 : i32 to vector<32x128xi32>
    %16 = arith.cmpi slt, %14, %15 : vector<32x128xi32>
    %17 = vector.broadcast %13 : vector<32x1xf32> to vector<32x128xf32>
    %18 = arith.subf %9, %17 : vector<32x128xf32>
    %cst_13 = arith.constant 0.000000e+00 : f32
    %19 = vector.broadcast %cst_13 : f32 to vector<32x128xf32>
    %20 = arith.select %16, %18, %19 : vector<32x128xi1>, vector<32x128xf32>
    %21 = arith.mulf %20, %20 : vector<32x128xf32>
    %cst_14 = arith.constant dense<0.000000e+00> : vector<32xf32>
    %22 = vector.multi_reduction <add>, %21, %cst_14 [1] : vector<32x128xf32> to vector<32xf32>
    %23 = vector.shape_cast %22 : vector<32xf32> to vector<32x1xf32>
    %cst_15 = arith.constant 3.125000e-02 : f32
    %24 = vector.broadcast %cst_15 : f32 to vector<32x1xf32>
    %25 = arith.mulf %23, %24 : vector<32x1xf32>
    %cst_16 = arith.constant 9.99999974E-6 : f32
    %26 = vector.broadcast %cst_16 : f32 to vector<32x1xf32>
    %27 = arith.addf %25, %26 : vector<32x1xf32>
    %28 = math.rsqrt %27 : vector<32x1xf32>
    %29 = vector.broadcast %28 : vector<32x1xf32> to vector<32x128xf32>
    %30 = arith.mulf %20, %29 : vector<32x128xf32>
    %c1 = arith.constant 1 : index
    %c0_17 = arith.constant 0 : index
    %31 = vector.load %arg4[%c1, %c0_17] : memref<3x128xf32, #tpu.memory_space<vmem>>, vector<1x128xf32>
    %32 = vector.broadcast %31 : vector<1x128xf32> to vector<32x128xf32>
    %33 = arith.mulf %30, %32 : vector<32x128xf32>
    %c2 = arith.constant 2 : index
    %c0_18 = arith.constant 0 : index
    %34 = vector.load %arg4[%c2, %c0_18] : memref<3x128xf32, #tpu.memory_space<vmem>>, vector<1x128xf32>
    %35 = vector.broadcast %34 : vector<1x128xf32> to vector<32x128xf32>
    %36 = arith.addf %33, %35 : vector<32x128xf32>
    %c0_19 = arith.constant 0 : index
    %c0_20 = arith.constant 0 : index
    %c0_21 = arith.constant 0 : index
    %c0_22 = arith.constant 0 : index
    %37 = vector.load %arg6[%c0_19, %c0_20, %c0_21, %c0_22] : memref<1x1x32x128xf32, #tpu.memory_space<vmem>>, vector<1x1x32x128xf32>
    %38 = vector.shape_cast %37 : vector<1x1x32x128xf32> to vector<32x128xf32>
    %39 = vector.shape_cast %36 : vector<32x128xf32> to vector<1x1x32x128xf32>
    tpu.vector_store %arg6[%c0_19, %c0_20, %c0_21, %c0_22], %39 {strides = array<i32>} : memref<1x1x32x128xf32, #tpu.memory_space<vmem>>, vector<1x1x32x128xf32>,
    return
  }
  func.func @transform_0(%arg0: i32, %arg1: i32) -> (i32, i32, i32, i32) {
    %c0_i32 = arith.constant 0 : i32
    %c0_i32_0 = arith.constant 0 : i32
    %c0_i32_1 = arith.constant 0 : i32
    return %arg1, %arg0, %c0_i32, %c0_i32_0 : i32, i32, i32, i32
  }
  func.func @transform_1(%arg0: i32, %arg1: i32) -> (i32, i32) {
    %c0_i32 = arith.constant 0 : i32
    %c0_i32_0 = arith.constant 0 : i32
    %c0_i32_1 = arith.constant 0 : i32
    return %c0_i32, %c0_i32_0 : i32, i32
  }
  func.func @transform_2(%arg0: i32, %arg1: i32) -> (i32, i32) {
    %c0_i32 = arith.constant 0 : i32
    %c0_i32_0 = arith.constant 0 : i32
    %c0_i32_1 = arith.constant 0 : i32
    return %c0_i32, %c0_i32_0 : i32, i32
  }
  func.func @transform_3(%arg0: i32, %arg1: i32) -> (i32, i32, i32) {
    %c0_i32 = arith.constant 0 : i32
    %c0_i32_0 = arith.constant 0 : i32
    %c0_i32_1 = arith.constant 0 : i32
    return %arg0, %c0_i32, %c0_i32_0 : i32, i32, i32
  }
  func.func @transform_4(%arg0: i32, %arg1: i32) -> (i32, i32, i32, i32) {
    %c0_i32 = arith.constant 0 : i32
    %c0_i32_0 = arith.constant 0 : i32
    %c0_i32_1 = arith.constant 0 : i32
    return %arg1, %arg0, %c0_i32, %c0_i32_0 : i32, i32, i32, i32
  }
}

</mosaic_0001>

<llo_original>
// kernel: dfsmn_layer.1
$region0: #{dfsmn_layer.1}
  #allocation0 [shape = 'u32[]', space=smem, size = 0x4, offset = 0x4, fixed_abs, tag = 'smem constant byte address 0x4 - core index']
  #allocation1 [shape = 'u32[72,128]{1,0:T(1,128)}', space=vmem, size = 0x9000, scoped, tag = 'internal scratch']
  %s0 = inlined_call_operand.vmem [shape: f32[2,3,48,128], index: 0, kind: input, shape index: {}]
  %s1 = inlined_call_operand.vmem [shape: f32[128,128], index: 1, kind: input, shape index: {}]
  %s2 = inlined_call_operand.vmem [shape: f32[3,128], index: 2, kind: input, shape index: {}]
  %s3 = inlined_call_operand.vmem [shape: f32[3,32,48], index: 3, kind: input, shape index: {}]
  %s4 = inlined_call_operand.vmem [shape: f32[2,3,32,128], index: 4, kind: output, shape index: {}]
  %s5 = sld [smem:[#allocation0]]
  $region49: #{dfsmn_layer.1} parent=0
    _
  %s7 = ssub.s32 1, %s5
  %s8 = scalar_select 0, %s7, %s5
  loop: start=0, step=1, limit=8
  $region2: #{dfsmn_layer.1} parent=0 // loop_pre_header
    _
  $region3: #{dfsmn_layer.1} parent=0 // loop_header
    %s10 = sphi 0, %s14
    %p11 = scmp.ge.s32.totalorder %s10, 8
    %s17 = sphi 0, %s29
    %s18 = sphi 0, %s25
    %s19 = sphi 0, %s17
    %s20 = sphi 0, %s18
    %s21 = sphi 0, %s19
    %s22 = sphi 0, %s20
    %s34 = sphi 0, %s36
    %s37 = sphi 0, %s34
    %s38 = sphi 0, %s37
    %s54 = sphi 0, %s38
    %s58 = sphi 0, %s58
    %s60 = sphi 0, %s58
    %s61 = sphi 0, %s60
    %s75 = sphi 0, %s61
    %s79 = sphi 0, %s79
    %s81 = sphi 0, %s79
    %s82 = sphi 0, %s81
    %s96 = sphi 0, %s82
    %s102 = sphi 0, %s104
    %s105 = sphi 0, %s102
    %s106 = sphi 0, %s105
    %s122 = sphi 0, %s106
    %s130 = sphi 0, %s132
    %s133 = sphi 0, %s130
    %s134 = sphi 0, %s133
    %s150 = sphi 0, %s134
  $region4: #{dfsmn_layer.1} parent=0 // loop_header_branch
    %13 = sbr.rel (%p11) target = $region8
  $region5: #{dfsmn_layer.1} parent=0 // loop_body
    %s15 = ssub.s32 %s10, 1
    %s16 = ssub.s32 %s10, 2
    %s23 = sadd.s32 1, %s18
    %p24 = scmp.ge.s32.totalorder %s23, 2
    %s25 = scalar_select %p24, 0, %s23
    %s26 = sadd.s32 1, %s17
    %s27 = scalar_select %p24, %s26, %s17
    %p28 = scmp.ge.s32.totalorder %s27, 3
    %s29 = scalar_select %p28, 0, %s27
    %s30 = ssub.s32 %s18, %s25
    %s31 = ssub.s32 %s17, %s29
    %s32 = sor.u32 %s30, %s31
    %p33 = scmp.eq.s32.totalorder %s32, 0
    %s35 = sadd.s32 %s34, 1
    %s36 = scalar_select %p33, %s34, %s35
    %p39 = pneg %p33
    %p40 = scmp.eq.s32.totalorder %s10, 5
    %p41 = por %p39, %p40
    %p42 = scmp.ne.s32.totalorder %s34, %s37
    %p43 = scmp.eq.s32.totalorder %s10, 0
    %p44 = por %p42, %p43
    %p45 = scmp.ne.s32.totalorder %s34, %s37
    %p46 = scmp.eq.s32.totalorder %s15, 5
    %p47 = por %p45, %p46
    %p48 = scmp.ne.s32.totalorder %s37, %s38
    %p49 = scmp.eq.s32.totalorder %s15, 0
    %p50 = por %p48, %p49
    %p51 = scmp.ne.s32.totalorder %s37, %s38
    %p52 = scmp.eq.s32.totalorder %s16, 5
    %p53 = por %p51, %p52
    %p55 = scmp.ne.s32.totalorder %s38, %s54
    %p56 = scmp.eq.s32.totalorder %s16, 0
    %p57 = por %p55, %p56
    %s59 = sadd.s32 %s58, 1
    %p62 = scmp.eq.s32.totalorder %s10, 5
    %p63 = scmp.ne.s32.totalorder %s58, %s60
    %p64 = scmp.eq.s32.totalorder %s10, 0
    %p65 = por %p63, %p64
    %p66 = scmp.ne.s32.totalorder %s58, %s60
    %p67 = scmp.eq.s32.totalorder %s15, 5
    %p68 = por %p66, %p67
    %p69 = scmp.ne.s32.totalorder %s60, %s61
    %p70 = scmp.eq.s32.totalorder %s15, 0
    %p71 = por %p69, %p70
    %p72 = scmp.ne.s32.totalorder %s60, %s61
    %p73 = scmp.eq.s32.totalorder %s16, 5
    %p74 = por %p72, %p73
    %p76 = scmp.ne.s32.totalorder %s61, %s75
    %p77 = scmp.eq.s32.totalorder %s16, 0
    %p78 = por %p76, %p77
    %s80 = sadd.s32 %s79, 1
    %p83 = scmp.eq.s32.totalorder %s10, 5
    %p84 = scmp.ne.s32.totalorder %s79, %s81
    %p85 = scmp.eq.s32.totalorder %s10, 0
    %p86 = por %p84, %p85
    %p87 = scmp.ne.s32.totalorder %s79, %s81
    %p88 = scmp.eq.s32.totalorder %s15, 5
    %p89 = por %p87, %p88
    %p90 = scmp.ne.s32.totalorder %s81, %s82
    %p91 = scmp.eq.s32.totalorder %s15, 0
    %p92 = por %p90, %p91
    %p93 = scmp.ne.s32.totalorder %s81, %s82
    %p94 = scmp.eq.s32.totalorder %s16, 5
    %p95 = por %p93, %p94
    %p97 = scmp.ne.s32.totalorder %s82, %s96
    %p98 = scmp.eq.s32.totalorder %s16, 0
    %p99 = por %p97, %p98
    %s100 = ssub.s32 %s17, %s29
    %p101 = scmp.eq.s32.totalorder %s100, 0
    %s103 = sadd.s32 %s102, 1
    %s104 = scalar_select %p101, %s102, %s103
    %p107 = pneg %p101
    %p108 = scmp.eq.s32.totalorder %s10, 5
    %p109 = por %p107, %p108
    %p110 = scmp.ne.s32.totalorder %s102, %s105
    %p111 = scmp.eq.s32.totalorder %s10, 0
    %p112 = por %p110, %p111
    %p113 = scmp.ne.s32.totalorder %s102, %s105
    %p114 = scmp.eq.s32.totalorder %s15, 5
    %p115 = por %p113, %p114
    %p116 = scmp.ne.s32.totalorder %s105, %s106
    %p117 = scmp.eq.s32.totalorder %s15, 0
    %p118 = por %p116, %p117
    %p119 = scmp.ne.s32.totalorder %s105, %s106
    %p120 = scmp.eq.s32.totalorder %s16, 5
    %p121 = por %p119, %p120
    %p123 = scmp.ne.s32.totalorder %s106, %s122
    %p124 = scmp.eq.s32.totalorder %s16, 0
    %p125 = por %p123, %p124
    %s126 = ssub.s32 %s18, %s25
    %s127 = ssub.s32 %s17, %s29
    %s128 = sor.u32 %s126, %s127
    %p129 = scmp.eq.s32.totalorder %s128, 0
    %s131 = sadd.s32 %s130, 1
    %s132 = scalar_select %p129, %s130, %s131
    %p135 = pneg %p129
    %p136 = scmp.eq.s32.totalorder %s10, 5
    %p137 = por %p135, %p136
    %p138 = scmp.ne.s32.totalorder %s130, %s133
    %p139 = scmp.eq.s32.totalorder %s10, 0
    %p140 = por %p138, %p139
    %p141 = scmp.ne.s32.totalorder %s130, %s133
    %p142 = scmp.eq.s32.totalorder %s15, 5
    %p143 = por %p141, %p142
    %p144 = scmp.ne.s32.totalorder %s133, %s134
    %p145 = scmp.eq.s32.totalorder %s15, 0
    %p146 = por %p144, %p145
    %p147 = scmp.ne.s32.totalorder %s133, %s134
    %p148 = scmp.eq.s32.totalorder %s16, 5
    %p149 = por %p147, %p148
    %p151 = scmp.ne.s32.totalorder %s134, %s150
    %p152 = scmp.eq.s32.totalorder %s16, 0
    %p153 = por %p151, %p152
    %p154 = scmp.le.s32.totalorder 1, %s10
    %p155 = scmp.lt.s32.totalorder %s10, 7
    %p156 = pnand %p154, %p155
    %p157 = pneg %p156
    // Predicated region
    $region9: #{dfsmn_layer.1} parent=5 // pred_check
      _
    $region10: #{dfsmn_layer.1} parent=5 // pred_check_branch
      %159 = sbr.rel (%p156) target = $region12
    $region11: #{dfsmn_layer.1} parent=5 // pred_region
      %s160 = ssub.s32 %s10, 1
      // Predicated region
      $region13: #{dfsmn_layer.1} parent=11 // pred_check
        %p161 = pneg %p71
      $region14: #{dfsmn_layer.1} parent=11 // pred_check_branch
        %163 = sbr.rel (%p161) target = $region16
      $region15: #{dfsmn_layer.1} parent=11 // pred_region
        _
      $region16: #{dfsmn_layer.1} parent=11 // pred_fallthru
        _
      // Predicated region
      $region17: #{dfsmn_layer.1} parent=11 // pred_check
        %p164 = pneg %p92
      $region18: #{dfsmn_layer.1} parent=11 // pred_check_branch
        %166 = sbr.rel (%p164) target = $region20
      $region19: #{dfsmn_layer.1} parent=11 // pred_region
        _
      $region20: #{dfsmn_layer.1} parent=11 // pred_fallthru
        _
    $region12: #{dfsmn_layer.1} parent=5 // pred_fallthru
      _
    %p167 = scmp.lt.s32.totalorder %s10, 6
    // Predicated region
    $region21: #{dfsmn_layer.1} parent=5 // pred_check
      %p168 = pneg %p167
    $region22: #{dfsmn_layer.1} parent=5 // pred_check_branch
      %170 = sbr.rel (%p168) target = $region24
    $region23: #{dfsmn_layer.1} parent=5 // pred_region
      // Predicated region
      $region25: #{dfsmn_layer.1} parent=23 // pred_check
        %p171 = pneg %p44
      $region26: #{dfsmn_layer.1} parent=23 // pred_check_branch
        %173 = sbr.rel (%p171) target = $region28
      $region27: #{dfsmn_layer.1} parent=23 // pred_region
        %p174 = scmp.lt.s32.totalorder %s18, 1
        %s175 = scalar_select %p174, %s18, 1
        %p176 = scmp.lt.s32.totalorder %s17, 2
        %s177 = scalar_select %p176, %s17, 2
        %s178 = smul.addr %s177, 6
        %s179 = smul.addr %s175, 18
        %s180 = sadd.s32 %s178, %s179
        %s181 = smul.addr %s180, 8
        %s182 = scalar_lea.vmem %s0, %s181
      $region28: #{dfsmn_layer.1} parent=23 // pred_fallthru
        _
      // Predicated region
      $region29: #{dfsmn_layer.1} parent=23 // pred_check
        %p183 = pneg %p112
      $region30: #{dfsmn_layer.1} parent=23 // pred_check_branch
        %185 = sbr.rel (%p183) target = $region32
      $region31: #{dfsmn_layer.1} parent=23 // pred_region
        %p186 = scmp.lt.s32.totalorder %s17, 2
        %s187 = scalar_select %p186, %s17, 2
        %s188 = smul.addr %s187, 4
        %s189 = smul.addr %s188, 8
        %s190 = scalar_lea.vmem %s3, %s189
      $region32: #{dfsmn_layer.1} parent=23 // pred_fallthru
        _
    $region24: #{dfsmn_layer.1} parent=5 // pred_fallthru
      _
    %p191 = scmp.le.s32.totalorder 1, %s10
    %p192 = scmp.lt.s32.totalorder %s10, 7
    %p193 = pnand %p191, %p192
    %p194 = pneg %p193
    // Predicated region
    $region33: #{dfsmn_layer.1} parent=5 // pred_check
      _
    $region34: #{dfsmn_layer.1} parent=5 // pred_check_branch
      %196 = sbr.rel (%p193) target = $region36
    $region35: #{dfsmn_layer.1} parent=5 // pred_region
      %s197 = ssub.s32 %s10, 1
      %p198 = scmp.lt.s32.totalorder %s20, 1
      %s199 = scalar_select %p198, %s20, 1
      %p200 = scmp.lt.s32.totalorder %s19, 2
      %s201 = scalar_select %p200, %s19, 2
      %s202 = smul.addr %s201, 6
      %s203 = smul.addr %s199, 18
      %s204 = sadd.s32 %s202, %s203
      %s205 = smul.addr %s204, 8
      %s206 = scalar_lea.vmem %s0, %s205
      %p207 = pneg %p50
      %p208 = pneg %p47
      %p209 = pneg %p71
      %p210 = pneg %p68
      %p211 = pneg %p92
      %p212 = pneg %p89
      %p213 = scmp.lt.s32.totalorder %s19, 2
      %s214 = scalar_select %p213, %s19, 2
      %s215 = smul.addr %s214, 4
      %s216 = smul.addr %s215, 8
      %s217 = scalar_lea.vmem %s3, %s216
      %p218 = pneg %p118
      %p219 = pneg %p115
      %p220 = pneg %p146
      %p221 = pneg %p143
      %p222 = scmp.lt.s32.totalorder %s20, 1
      %s223 = scalar_select %p222, %s20, 1
      %p224 = scmp.lt.s32.totalorder %s19, 2
      %s225 = scalar_select %p224, %s19, 2
      %s226 = smul.addr %s225, 4
      %s227 = smul.addr %s223, 12
      %s228 = sadd.s32 %s226, %s227
      %s229 = smul.addr %s228, 8
      %s230 = scalar_lea.vmem %s4, %s229
      %p231 = scmp.lt.s32.totalorder %s20, 1
      %s232 = scalar_select %p231, %s20, 1
      %p233 = scmp.lt.s32.totalorder %s19, 2
      %s234 = scalar_select %p233, %s19, 2
      %s235 = smul.addr %s234, 6
      %s236 = smul.addr %s232, 18
      %s237 = sadd.s32 %s235, %s236
      %s238 = smul.addr %s237, 8
      %s239 = scalar_lea.vmem %s0, %s238
      %p240 = scmp.lt.s32.totalorder %s19, 2
      %s241 = scalar_select %p240, %s19, 2
      %s242 = smul.addr %s241, 4
      %s243 = smul.addr %s242, 8
      %s244 = scalar_lea.vmem %s3, %s243
      %p245 = scmp.lt.s32.totalorder %s20, 1
      %s246 = scalar_select %p245, %s20, 1
      %p247 = scmp.lt.s32.totalorder %s19, 2
      %s248 = scalar_select %p247, %s19, 2
      %s249 = smul.addr %s248, 4
      %s250 = smul.addr %s246, 12
      %s251 = sadd.s32 %s249, %s250
      %s252 = smul.addr %s251, 8
      %s253 = scalar_lea.vmem %s4, %s252
      %v254 = vld [vmem:[%s239] sm:$0xff]
      %v255 = vld [vmem:[%s239 + $0x8] sm:$0xff]
      %v256 = vld [vmem:[%s239 + $0x10] sm:$0xff]
      %v257 = vld [vmem:[%s239 + $0x18] sm:$0xff]
      %v258 = vld [vmem:[%s239 + $0x20] sm:$0xff]
      %v259 = vld [vmem:[%s239 + $0x28] sm:$0xff]
      %v260 = vld [vmem:[%s1] sm:$0xff]
      %v261 = vld [vmem:[%s1 + $0x8] sm:$0xff]
      %v262 = vld [vmem:[%s1 + $0x10] sm:$0xff]
      %v263 = vld [vmem:[%s1 + $0x18] sm:$0xff]
      %v264 = vld [vmem:[%s1 + $0x20] sm:$0xff]
      %v265 = vld [vmem:[%s1 + $0x28] sm:$0xff]
      %v266 = vld [vmem:[%s1 + $0x30] sm:$0xff]
      %v267 = vld [vmem:[%s1 + $0x38] sm:$0xff]
      %v268 = vld [vmem:[%s1 + $0x40] sm:$0xff]
      %v269 = vld [vmem:[%s1 + $0x48] sm:$0xff]
      %v270 = vld [vmem:[%s1 + $0x50] sm:$0xff]
      %v271 = vld [vmem:[%s1 + $0x58] sm:$0xff]
      %v272 = vld [vmem:[%s1 + $0x60] sm:$0xff]
      %v273 = vld [vmem:[%s1 + $0x68] sm:$0xff]
      %v274 = vld [vmem:[%s1 + $0x70] sm:$0xff]
      %v275 = vld [vmem:[%s1 + $0x78] sm:$0xff]
      %v276 = vld [vmem:[%s2] sm:$0x1]
      %v277 = vperm.slane %v276, 0
      %278 = vmatpush.msra.mxu0 %v275
      %279 = vmatpush.msra.mxu0 %v274
      %280 = vmatpush.msra.mxu0 %v273
      %281 = vmatpush.msra.mxu0 %v272
      %282 = vmatpush.msra.mxu0 %v271
      %283 = vmatpush.msra.mxu0 %v270
      %284 = vmatpush.msra.mxu0 %v269
      %285 = vmatpush.msra.mxu0 %v268
      %286 = vmatpush.msra.mxu0 %v267
      %287 = vmatpush.msra.mxu0 %v266
      %288 = vmatpush.msra.mxu0 %v265
      %289 = vmatpush.msra.mxu0 %v264
      %290 = vmatpush.msra.mxu0 %v263
      %291 = vmatpush.msra.mxu0 %v262
      %292 = vmatpush.msra.mxu0 %v261
      %293 = vmatpush.msra.mxu0 %v260
      %294 = vmatmul.f32.gmra.mxu0 %v254
      %v295 = vpop.f32.mrf.mxu0
      %v296 = vadd.f32 %v277, %v295
      %297 = vmatmul.f32.gmra.mxu0 %v255
      %v298 = vpop.f32.mrf.mxu0
      %v299 = vadd.f32 %v277, %v298
      %300 = vmatmul.f32.gmra.mxu0 %v256
      %v301 = vpop.f32.mrf.mxu0
      %v302 = vadd.f32 %v277, %v301
      %303 = vmatmul.f32.gmra.mxu0 %v257
      %v304 = vpop.f32.mrf.mxu0
      %v305 = vadd.f32 %v277, %v304
      %306 = vmatmul.f32.gmra.mxu0 %v258
      %v307 = vpop.f32.mrf.mxu0
      %v308 = vadd.f32 %v277, %v307
      %309 = vmatmul.f32.gmra.mxu0 %v259
      %v310 = vpop.f32.mrf.mxu0
      %v311 = vadd.f32 %v277, %v310
      %312 = vdwg.mxu0
      %v313 = vld [vmem:[%s244] sm:$0xff]
      %v314 = vld [vmem:[%s244 + $0x8] sm:$0xff]
      %v315 = vld [vmem:[%s244 + $0x10] sm:$0xff]
      %v316 = vld [vmem:[%s244 + $0x18] sm:$0xff]
      %vm317 = vcmask 392192
      %v319 = vsel %vm317, %v313, 0
      %v322 = vsel %vm317, %v314, 0
      %v325 = vsel %vm317, %v315, 0
      %v328 = vsel %vm317, %v316, 0
      %330 = vmatpush.msra.mxu0 0.0
      %331 = vmatpush.msra.mxu0 0.0
      %332 = vmatpush.msra.mxu0 0.0
      %333 = vmatpush.msra.mxu0 0.0
      %334 = vmatpush.msra.mxu0 0.0
      %335 = vmatpush.msra.mxu0 0.0
      %336 = vmatpush.msra.mxu0 0.0
      %337 = vmatpush.msra.mxu0 0.0
      %338 = vmatpush.msra.mxu0 0.0
      %339 = vmatpush.msra.mxu0 0.0
      %340 = vmatpush.msra.mxu0 %v311
      %341 = vmatpush.msra.mxu0 %v308
      %342 = vmatpush.msra.mxu0 %v305
      %343 = vmatpush.msra.mxu0 %v302
      %344 = vmatpush.msra.mxu0 %v299
      %345 = vmatpush.msra.mxu0 %v296
      %346 = vmatmul.f32.gmra.mxu0 %v319
      %v347 = vpop.f32.mrf.mxu0
      %v348 = vadd.f32 0.0, %v347
      %349 = vmatmul.f32.gmra.mxu0 %v322
      %v350 = vpop.f32.mrf.mxu0
      %v351 = vadd.f32 0.0, %v350
      %352 = vmatmul.f32.gmra.mxu0 %v325
      %v353 = vpop.f32.mrf.mxu0
      %v354 = vadd.f32 0.0, %v353
      %355 = vmatmul.f32.gmra.mxu0 %v328
      %v356 = vpop.f32.mrf.mxu0
      %v357 = vadd.f32 0.0, %v356
      %358 = vdwg.mxu0
      %359 = vadd.xlane.f32.xlu0 %v348
      %v360 = vpop.xlane.xlu0 %359
      %361 = vadd.xlane.f32.xlu0 %v351
      %v362 = vpop.xlane.xlu0 %361
      %363 = vadd.xlane.f32.xlu0 %v354
      %v364 = vpop.xlane.xlu0 %363
      %365 = vadd.xlane.f32.xlu0 %v357
      %v366 = vpop.xlane.xlu0 %365
      %v367 = vmul.f32 %v360, 0.03125
      %v368 = vmul.f32 %v362, 0.03125
      %v369 = vmul.f32 %v364, 0.03125
      %v370 = vmul.f32 %v366, 0.03125
      %v371 = vlaneseq
      %v372 = vand.u32 %v371, 127
      %vm373 = vcmp.lt.s32.totalorder %v372, 32
      %v374 = vsub.f32 %v348, %v367
      %v375 = vsub.f32 %v351, %v368
      %v376 = vsub.f32 %v354, %v369
      %v377 = vsub.f32 %v357, %v370
      %v378 = vsel %vm373, %v374, 0.0
      %v379 = vsel %vm373, %v375, 0.0
      %v380 = vsel %vm373, %v376, 0.0
      %v381 = vsel %vm373, %v377, 0.0
      %v382 = vmul.f32 %v378, %v378
      %v383 = vmul.f32 %v379, %v379
      %v384 = vmul.f32 %v380, %v380
      %v385 = vmul.f32 %v381, %v381
      %386 = vadd.xlane.f32.xlu0 %v382
      %v387 = vpop.xlane.xlu0 %386
      %388 = vadd.xlane.f32.xlu0 %v383
      %v389 = vpop.xlane.xlu0 %388
      %390 = vadd.xlane.f32.xlu0 %v384
      %v391 = vpop.xlane.xlu0 %390
      %392 = vadd.xlane.f32.xlu0 %v385
      %v393 = vpop.xlane.xlu0 %392
      %v394 = vmul.f32 %v387, 0.03125
      %v395 = vmul.f32 %v389, 0.03125
      %v396 = vmul.f32 %v391, 0.03125
      %v397 = vmul.f32 %v393, 0.03125
      %v398 = vadd.f32 %v394, 1e-05
      %v399 = vadd.f32 %v395, 1e-05
      %v400 = vadd.f32 %v396, 1e-05
      %v401 = vadd.f32 %v397, 1e-05
      %v402 = vrsqrt.pop %v398
      %v403 = vmul.f32 %v402, %v398
      %v404 = vmul.f32 %v403, %v402
      %v405 = vmul.f32 0.5, %v404
      %v406 = vsub.f32 1.5, %v405
      %v407 = vmul.f32 %v402, %v406
      %vm408 = vweird.f32 %v398
      %vm409 = vweird.f32 %v402
      %vm410 = vmor %vm408, %vm409
      %v411 = vsel %vm410, %v402, %v407
      %v412 = vrsqrt.pop %v399
      %v413 = vmul.f32 %v412, %v399
      %v414 = vmul.f32 %v413, %v412
      %v415 = vmul.f32 0.5, %v414
      %v416 = vsub.f32 1.5, %v415
      %v417 = vmul.f32 %v412, %v416
      %vm418 = vweird.f32 %v399
      %vm419 = vweird.f32 %v412
      %vm420 = vmor %vm418, %vm419
      %v421 = vsel %vm420, %v412, %v417
      %v422 = vrsqrt.pop %v400
      %v423 = vmul.f32 %v422, %v400
      %v424 = vmul.f32 %v423, %v422
      %v425 = vmul.f32 0.5, %v424
      %v426 = vsub.f32 1.5, %v425
      %v427 = vmul.f32 %v422, %v426
      %vm428 = vweird.f32 %v400
      %vm429 = vweird.f32 %v422
      %vm430 = vmor %vm428, %vm429
      %v431 = vsel %vm430, %v422, %v427
      %v432 = vrsqrt.pop %v401
      %v433 = vmul.f32 %v432, %v401
      %v434 = vmul.f32 %v433, %v432
      %v435 = vmul.f32 0.5, %v434
      %v436 = vsub.f32 1.5, %v435
      %v437 = vmul.f32 %v432, %v436
      %vm438 = vweird.f32 %v401
      %vm439 = vweird.f32 %v432
      %vm440 = vmor %vm438, %vm439
      %v441 = vsel %vm440, %v432, %v437
      %v442 = vmul.f32 %v378, %v411
      %v443 = vmul.f32 %v379, %v421
      %v444 = vmul.f32 %v380, %v431
      %v445 = vmul.f32 %v381, %v441
      %v446 = vld [vmem:[%s2 + $0x1] sm:$0x1]
      %v447 = vperm.slane %v446, 0
      %v448 = vmul.f32 %v442, %v447
      %v449 = vmul.f32 %v443, %v447
      %v450 = vmul.f32 %v444, %v447
      %v451 = vmul.f32 %v445, %v447
      %v452 = vld [vmem:[%s2 + $0x2] sm:$0x1]
      %v453 = vperm.slane %v452, 0
      %v454 = vadd.f32 %v448, %v453
      %v455 = vadd.f32 %v449, %v453
      %v456 = vadd.f32 %v450, %v453
      %v457 = vadd.f32 %v451, %v453
      %458 = vst [vmem:[%s253] sm:$0xff] %v454
      %459 = vst [vmem:[%s253 + $0x8] sm:$0xff] %v455
      %460 = vst [vmem:[%s253 + $0x10] sm:$0xff] %v456
      %461 = vst [vmem:[%s253 + $0x18] sm:$0xff] %v457
      %p462 = scmp.lt.s32.totalorder %s20, 1
      %s463 = scalar_select %p462, %s20, 1
      %p464 = scmp.lt.s32.totalorder %s19, 2
      %s465 = scalar_select %p464, %s19, 2
      %s466 = smul.addr %s465, 4
      %s467 = smul.addr %s463, 12
      %s468 = sadd.s32 %s466, %s467
      %s469 = smul.addr %s468, 8
      %s470 = scalar_lea.vmem %s4, %s469
      // Predicated region
      $region37: #{dfsmn_layer.1} parent=35 // pred_check
        %p471 = pneg %p143
      $region38: #{dfsmn_layer.1} parent=35 // pred_check_branch
        %473 = sbr.rel (%p471) target = $region40
      $region39: #{dfsmn_layer.1} parent=35 // pred_region
        _
      $region40: #{dfsmn_layer.1} parent=35 // pred_fallthru
        _
    $region36: #{dfsmn_layer.1} parent=5 // pred_fallthru
      _
    %p474 = scmp.le.s32.totalorder 2, %s10
    // Predicated region
    $region41: #{dfsmn_layer.1} parent=5 // pred_check
      %p475 = pneg %p474
    $region42: #{dfsmn_layer.1} parent=5 // pred_check_branch
      %477 = sbr.rel (%p475) target = $region44
    $region43: #{dfsmn_layer.1} parent=5 // pred_region
      %s478 = ssub.s32 %s10, 2
      // Predicated region
      $region45: #{dfsmn_layer.1} parent=43 // pred_check
        %p479 = pneg %p149
      $region46: #{dfsmn_layer.1} parent=43 // pred_check_branch
        %481 = sbr.rel (%p479) target = $region48
      $region47: #{dfsmn_layer.1} parent=43 // pred_region
        %p482 = scmp.lt.s32.totalorder %s22, 1
        %s483 = scalar_select %p482, %s22, 1
        %p484 = scmp.lt.s32.totalorder %s21, 2
        %s485 = scalar_select %p484, %s21, 2
        %s486 = smul.addr %s485, 4
        %s487 = smul.addr %s483, 12
        %s488 = sadd.s32 %s486, %s487
        %s489 = smul.addr %s488, 8
        %s490 = scalar_lea.vmem %s4, %s489
      $region48: #{dfsmn_layer.1} parent=43 // pred_fallthru
        _
    $region44: #{dfsmn_layer.1} parent=5 // pred_fallthru
      _
  $region6: #{dfsmn_layer.1} parent=0 // loop_footer
    %s14 = sadd.s32 1, %s10
  $region7: #{dfsmn_layer.1} parent=0 // loop_footer_branch
    %9 = sbr.rel target = $region3
  $region8: #{dfsmn_layer.1} parent=0 // loop_exit
    _

</llo_original>
